<compile_context>
chip_gen: v7x
topology: tpu7x:2x2x1
jax: 0.10.0
libtpu: 0.0.40
codegen_flags: <defaults>
</compile_context>

<pallas_src>
import functools

import jax
import jax.numpy as jnp
from jax.experimental import pallas as pl
from jax.experimental.pallas import tpu as pltpu

LANES = 128


def _mish_kernel(x_ref, o_ref, *, approx_recip: bool):
    x = x_ref[...].astype(jnp.float32)
    xc = jnp.minimum(x, 20.0)            # guard: exp(20)^2 ~ 2.4e17, safe in f32
    e = jnp.exp(xc)
    t = e * (e + 2.0)
    # tanh(log1p(e)) == ((1+e)^2 - 1) / ((1+e)^2 + 1) == t / (t + 2)
    if approx_recip:
        ratio = t * pl.reciprocal(t + 2.0, approx=True)   # sub-f32 outputs only
    else:
        ratio = t / (t + 2.0)
    # For x > 20, tanh(softplus(x)) == 1 to f32 precision -> y = x
    y = jnp.where(x > 20.0, x, x * ratio)
    o_ref[...] = y.astype(o_ref.dtype)


def _packing(dtype) -> int:
    """Sublane packing factor for the dtype (rows of a packed (pack,128) tile)."""
    return {4: 8, 2: 16, 1: 32}.get(jnp.dtype(dtype).itemsize, 8)


def _target_block_bytes() -> int:
    """Per-buffer block size: 2 MiB (v5e/v6e), 4 MiB on v7x (amortize per-step overhead)."""
    try:
        kind = jax.devices()[0].device_kind.lower()
    except Exception:
        kind = ""
    if "v7" in kind or "7x" in kind:
        return 4 * 1024 * 1024
    return 2 * 1024 * 1024


def _mish_2d(x2d: jax.Array) -> jax.Array:
    """Run the Pallas kernel over a lane-dense (rows, 128) slab."""
    rows, _ = x2d.shape
    dtype = x2d.dtype
    pack = _packing(dtype)
    itemsize = jnp.dtype(dtype).itemsize
    approx = itemsize < 4   # approx recip only where output precision tolerates it

    tr_target = max(pack, (_target_block_bytes() // (LANES * itemsize)) // pack * pack)

    if rows <= pack:
        tr = rows                         # single full-extent block (divisibility-exempt)
    else:
        # Cap tr so the grid has >= 2 steps (megacore sharding + DMA/compute overlap),
        # while keeping blocks as large as the ~2/4 MiB target allows.
        half = -(-rows // 2)              # cdiv(rows, 2)
        half = -(-half // pack) * pack    # round up to the packing multiple
        tr = max(pack, min(tr_target, half))
    grid = (pl.cdiv(rows, tr),)           # ragged last block masked by Pallas

    kernel = functools.partial(_mish_kernel, approx_recip=approx)
    return pl.pallas_call(
        kernel,
        out_shape=jax.ShapeDtypeStruct((rows, LANES), dtype),
        grid=grid,
        in_specs=[pl.BlockSpec((tr, LANES), lambda i: (i, 0))],
        out_specs=pl.BlockSpec((tr, LANES), lambda i: (i, 0)),
        compiler_params=pltpu.CompilerParams(
            dimension_semantics=("parallel",),
            vmem_limit_bytes=32 * 1024 * 1024,
        ),
    )(x2d)


def _mish_jnp(x: jax.Array) -> jax.Array:
    """Plain-jnp path for sub-128-element tails (same formula as the kernel)."""
    xf = x.astype(jnp.float32)
    e = jnp.exp(jnp.minimum(xf, 20.0))
    t = e * (e + 2.0)
    y = jnp.where(xf > 20.0, xf, xf * (t / (t + 2.0)))
    return y.astype(x.dtype)


def _mish_impl(x: jax.Array) -> jax.Array:
    orig_shape = x.shape
    n = x.size
    x_flat = jnp.reshape(x, (-1,))

    n_main = (n // LANES) * LANES
    if n_main == 0:
        # Entire input is smaller than one lane row; trivial jnp computation.
        return jnp.reshape(_mish_jnp(x_flat), orig_shape)

    if n_main == n:
        # Fast path (common NN shapes): zero-copy lane-dense reshape, no pad/slice.
        out2d = _mish_2d(jnp.reshape(x_flat, (n // LANES, LANES)))
        return jnp.reshape(out2d, orig_shape)

    # Unaligned size: kernel on the 128-aligned prefix, tiny jnp tail, no
    # full-array pad + slice round trips.
    main2d = jnp.reshape(x_flat[:n_main], (n_main // LANES, LANES))
    out_main = jnp.reshape(_mish_2d(main2d), (-1,))
    out_tail = _mish_jnp(x_flat[n_main:])
    return jnp.reshape(jnp.concatenate([out_main, out_tail]), orig_shape)


mish = jax.jit(_mish_impl)


def mish_ref(x):
    # Pure-JAX reference (canonical formula, PyTorch softplus threshold=20).
    xf = x.astype(jnp.float32)
    sp = jnp.where(xf > 20.0, xf, jnp.log1p(jnp.exp(jnp.minimum(xf, 20.0))))
    return (xf * jnp.tanh(sp)).astype(x.dtype)


if __name__ == "__main__":
    key = jax.random.PRNGKey(0)

    # Primary (module-shaped) test: NCHW, 128-aligned fast path.
    x = jax.random.normal(key, (2, 4, 16, 16), dtype=jnp.float32) * 3.0
    y = jax.block_until_ready(mish(x))
    y_ref = mish_ref(x)
    assert y.shape == x.shape and y.dtype == x.dtype
    assert jnp.allclose(y, y_ref, atol=1e-5, rtol=1e-5), "f32 mismatch vs reference"

    # Unaligned-size path (aligned prefix kernel + jnp tail).
    x2 = jax.random.normal(jax.random.PRNGKey(1), (3, 5, 7, 11), dtype=jnp.float32) * 4.0
    y2 = jax.block_until_ready(mish(x2))
    assert jnp.allclose(y2, mish_ref(x2), atol=1e-5, rtol=1e-5), "unaligned mismatch"

    # bf16 path (packed sublane tile, approx-reciprocal variant of the kernel).
    x3 = (jax.random.normal(jax.random.PRNGKey(2), (2, 4, 16, 16)) * 3.0).astype(jnp.bfloat16)
    y3 = jax.block_until_ready(mish(x3))
    assert jnp.allclose(y3.astype(jnp.float32), mish_ref(x3).astype(jnp.float32),
                        atol=2e-2, rtol=2e-2), "bf16 mismatch"

    print("KERNEL_OK")
</pallas_src>

<mosaic_0001>
module attributes {stable_mosaic.version = 11 : i64} {
  func.func @_mish_kernel(%arg0: i32, %arg1: memref<8x128xf32, #tpu.memory_space<vmem>>, %arg2: memref<8x128xf32, #tpu.memory_space<vmem>>) attributes {dimension_semantics = [#tpu.dimension_semantics<parallel>], iteration_bounds = array<i64: 2>, scalar_prefetch = 0 : i64, scratch_operands = 0 : i64, tpu.core_type = #tpu.core_type<tc>, window_params = [{transform_indices = @transform_0, window_bounds = array<i64: 8, 128>}, {transform_indices = @transform_1, window_bounds = array<i64: 8, 128>}]} {
    %c0 = arith.constant 0 : index
    %c0_0 = arith.constant 0 : index
    %0 = vector.load %arg1[%c0, %c0_0] : memref<8x128xf32, #tpu.memory_space<vmem>>, vector<8x128xf32>
    %cst = arith.constant 2.000000e+01 : f32
    %1 = vector.broadcast %cst : f32 to vector<8x128xf32>
    %2 = arith.minimumf %0, %1 : vector<8x128xf32>
    %3 = math.exp %2 : vector<8x128xf32>
    %cst_1 = arith.constant 2.000000e+00 : f32
    %4 = vector.broadcast %cst_1 : f32 to vector<8x128xf32>
    %5 = arith.addf %3, %4 : vector<8x128xf32>
    %6 = arith.mulf %3, %5 : vector<8x128xf32>
    %cst_2 = arith.constant 2.000000e+00 : f32
    %7 = vector.broadcast %cst_2 : f32 to vector<8x128xf32>
    %8 = arith.addf %6, %7 : vector<8x128xf32>
    %9 = arith.divf %6, %8 : vector<8x128xf32>
    %cst_3 = arith.constant 2.000000e+01 : f32
    %10 = vector.broadcast %cst_3 : f32 to vector<8x128xf32>
    %11 = arith.cmpf ogt, %0, %10 : vector<8x128xf32>
    %12 = arith.mulf %0, %9 : vector<8x128xf32>
    %13 = arith.select %11, %0, %12 : vector<8x128xi1>, vector<8x128xf32>
    %c0_4 = arith.constant 0 : index
    %c0_5 = arith.constant 0 : index
    %14 = vector.load %arg2[%c0_4, %c0_5] : memref<8x128xf32, #tpu.memory_space<vmem>>, vector<8x128xf32>
    tpu.vector_store %arg2[%c0_4, %c0_5], %13 {strides = array<i32>} : memref<8x128xf32, #tpu.memory_space<vmem>>, vector<8x128xf32>,
    return
  }
  func.func @transform_0(%arg0: i32) -> (i32, i32) {
    %c0_i32 = arith.constant 0 : i32
    %c0_i32_0 = arith.constant 0 : i32
    return %arg0, %c0_i32 : i32, i32
  }
  func.func @transform_1(%arg0: i32) -> (i32, i32) {
    %c0_i32 = arith.constant 0 : i32
    %c0_i32_0 = arith.constant 0 : i32
    return %arg0, %c0_i32 : i32, i32
  }
}

</mosaic_0001>

<llo_original>
// kernel: _mish_impl.1
$region0: #{_mish_impl.1}
  #allocation0 [shape = 'u32[]', space=smem, size = 0x4, offset = 0x4, fixed_abs, tag = 'smem constant byte address 0x4 - core index']
  #allocation1 [shape = 'u32[144,128]{1,0:T(1,128)}', space=vmem, size = 0x12000, scoped, tag = 'internal scratch']
  %s0 = inlined_call_operand.vmem [shape: f32[16,128], index: 0, kind: input, shape index: {}]
  %s1 = inlined_call_operand.vmem [shape: f32[16,128], index: 1, kind: output, shape index: {}]
  %s2 = sld [smem:[#allocation0]]
  $region37: #{_mish_impl.1} parent=0
    _
  %s4 = ssub.s32 1, %s2
  %s5 = scalar_select 0, %s4, %s2
  loop: start=0, step=1, limit=4
  $region2: #{_mish_impl.1} parent=0 // loop_pre_header
    _
  $region3: #{_mish_impl.1} parent=0 // loop_header
    %s7 = sphi 0, %s11
    %p8 = scmp.ge.s32.totalorder %s7, 4
    %s17 = sphi 0, %s19
    %s20 = sphi 0, %s17
    %s21 = sphi 0, %s20
    %s37 = sphi 0, %s21
    %s43 = sphi 0, %s45
    %s46 = sphi 0, %s43
    %s47 = sphi 0, %s46
    %s63 = sphi 0, %s47
  $region4: #{_mish_impl.1} parent=0 // loop_header_branch
    %10 = sbr.rel (%p8) target = $region8
  $region5: #{_mish_impl.1} parent=0 // loop_body
    %s12 = ssub.s32 %s7, 1
    %s13 = ssub.s32 %s7, 2
    %s14 = sadd.s32 %s7, 1
    %s15 = ssub.s32 %s7, %s14
    %p16 = scmp.eq.s32.totalorder %s15, 0
    %s18 = sadd.s32 %s17, 1
    %s19 = scalar_select %p16, %s17, %s18
    %p22 = pneg %p16
    %p23 = scmp.eq.s32.totalorder %s7, 1
    %p24 = por %p22, %p23
    %p25 = scmp.ne.s32.totalorder %s17, %s20
    %p26 = scmp.eq.s32.totalorder %s7, 0
    %p27 = por %p25, %p26
    %p28 = scmp.ne.s32.totalorder %s17, %s20
    %p29 = scmp.eq.s32.totalorder %s12, 1
    %p30 = por %p28, %p29
    %p31 = scmp.ne.s32.totalorder %s20, %s21
    %p32 = scmp.eq.s32.totalorder %s12, 0
    %p33 = por %p31, %p32
    %p34 = scmp.ne.s32.totalorder %s20, %s21
    %p35 = scmp.eq.s32.totalorder %s13, 1
    %p36 = por %p34, %p35
    %p38 = scmp.ne.s32.totalorder %s21, %s37
    %p39 = scmp.eq.s32.totalorder %s13, 0
    %p40 = por %p38, %p39
    %s41 = ssub.s32 %s7, %s14
    %p42 = scmp.eq.s32.totalorder %s41, 0
    %s44 = sadd.s32 %s43, 1
    %s45 = scalar_select %p42, %s43, %s44
    %p48 = pneg %p42
    %p49 = scmp.eq.s32.totalorder %s7, 1
    %p50 = por %p48, %p49
    %p51 = scmp.ne.s32.totalorder %s43, %s46
    %p52 = scmp.eq.s32.totalorder %s7, 0
    %p53 = por %p51, %p52
    %p54 = scmp.ne.s32.totalorder %s43, %s46
    %p55 = scmp.eq.s32.totalorder %s12, 1
    %p56 = por %p54, %p55
    %p57 = scmp.ne.s32.totalorder %s46, %s47
    %p58 = scmp.eq.s32.totalorder %s12, 0
    %p59 = por %p57, %p58
    %p60 = scmp.ne.s32.totalorder %s46, %s47
    %p61 = scmp.eq.s32.totalorder %s13, 1
    %p62 = por %p60, %p61
    %p64 = scmp.ne.s32.totalorder %s47, %s63
    %p65 = scmp.eq.s32.totalorder %s13, 0
    %p66 = por %p64, %p65
    %p67 = scmp.le.s32.totalorder 1, %s7
    %p68 = scmp.lt.s32.totalorder %s7, 3
    %p69 = pnand %p67, %p68
    %p70 = pneg %p69
    // Predicated region
    $region9: #{_mish_impl.1} parent=5 // pred_check
      _
    $region10: #{_mish_impl.1} parent=5 // pred_check_branch
      %72 = sbr.rel (%p69) target = $region12
    $region11: #{_mish_impl.1} parent=5 // pred_region
      %s73 = ssub.s32 %s7, 1
    $region12: #{_mish_impl.1} parent=5 // pred_fallthru
      _
    %p74 = scmp.lt.s32.totalorder %s7, 2
    // Predicated region
    $region13: #{_mish_impl.1} parent=5 // pred_check
      %p75 = pneg %p74
    $region14: #{_mish_impl.1} parent=5 // pred_check_branch
      %77 = sbr.rel (%p75) target = $region16
    $region15: #{_mish_impl.1} parent=5 // pred_region
      // Predicated region
      $region17: #{_mish_impl.1} parent=15 // pred_check
        %p78 = pneg %p27
      $region18: #{_mish_impl.1} parent=15 // pred_check_branch
        %80 = sbr.rel (%p78) target = $region20
      $region19: #{_mish_impl.1} parent=15 // pred_region
        %p81 = scmp.lt.s32.totalorder %s7, 1
        %s82 = scalar_select %p81, %s7, 1
        %s83 = smul.addr %s82, 8
        %s84 = scalar_lea.vmem %s0, %s83
      $region20: #{_mish_impl.1} parent=15 // pred_fallthru
        _
    $region16: #{_mish_impl.1} parent=5 // pred_fallthru
      _
    %p85 = scmp.le.s32.totalorder 1, %s7
    %p86 = scmp.lt.s32.totalorder %s7, 3
    %p87 = pnand %p85, %p86
    %p88 = pneg %p87
    // Predicated region
    $region21: #{_mish_impl.1} parent=5 // pred_check
      _
    $region22: #{_mish_impl.1} parent=5 // pred_check_branch
      %90 = sbr.rel (%p87) target = $region24
    $region23: #{_mish_impl.1} parent=5 // pred_region
      %s91 = ssub.s32 %s7, 1
      %p92 = scmp.lt.s32.totalorder %s12, 1
      %s93 = scalar_select %p92, %s12, 1
      %s94 = smul.addr %s93, 8
      %s95 = scalar_lea.vmem %s0, %s94
      %p96 = pneg %p33
      %p97 = pneg %p30
      %p98 = pneg %p59
      %p99 = pneg %p56
      %p100 = scmp.lt.s32.totalorder %s12, 1
      %s101 = scalar_select %p100, %s12, 1
      %s102 = smul.addr %s101, 8
      %s103 = scalar_lea.vmem %s1, %s102
      %p104 = scmp.lt.s32.totalorder %s12, 1
      %s105 = scalar_select %p104, %s12, 1
      %s106 = smul.addr %s105, 8
      %s107 = scalar_lea.vmem %s0, %s106
      %p108 = scmp.lt.s32.totalorder %s12, 1
      %s109 = scalar_select %p108, %s12, 1
      %s110 = smul.addr %s109, 8
      %s111 = scalar_lea.vmem %s1, %s110
      %v112 = vld [vmem:[%s107] sm:$0xff]
      %v113 = vmin.f32 %v112, 20.0
      %v114 = vmul.f32 %v113, 1.442695
      %v115 = vpow.pop %v114
      %v116 = vadd.f32 %v115, 2.0
      %v117 = vmul.f32 %v115, %v116
      %v118 = vadd.f32 %v117, 2.0
      %v119 = vrcp.pop %v118
      %v120 = vmul.f32 %v117, %v119
      %vm121 = vcmp.gt.f32.partialorder %v112, 20.0
      %v122 = vmul.f32 %v112, %v120
      %v123 = vsel %vm121, %v112, %v122
      %124 = vst [vmem:[%s111] sm:$0xff] %v123
      %p125 = scmp.lt.s32.totalorder %s12, 1
      %s126 = scalar_select %p125, %s12, 1
      %s127 = smul.addr %s126, 8
      %s128 = scalar_lea.vmem %s1, %s127
      // Predicated region
      $region25: #{_mish_impl.1} parent=23 // pred_check
        %p129 = pneg %p56
      $region26: #{_mish_impl.1} parent=23 // pred_check_branch
        %131 = sbr.rel (%p129) target = $region28
      $region27: #{_mish_impl.1} parent=23 // pred_region
        _
      $region28: #{_mish_impl.1} parent=23 // pred_fallthru
        _
    $region24: #{_mish_impl.1} parent=5 // pred_fallthru
      _
    %p132 = scmp.le.s32.totalorder 2, %s7
    // Predicated region
    $region29: #{_mish_impl.1} parent=5 // pred_check
      %p133 = pneg %p132
    $region30: #{_mish_impl.1} parent=5 // pred_check_branch
      %135 = sbr.rel (%p133) target = $region32
    $region31: #{_mish_impl.1} parent=5 // pred_region
      %s136 = ssub.s32 %s7, 2
      // Predicated region
      $region33: #{_mish_impl.1} parent=31 // pred_check
        %p137 = pneg %p62
      $region34: #{_mish_impl.1} parent=31 // pred_check_branch
        %139 = sbr.rel (%p137) target = $region36
      $region35: #{_mish_impl.1} parent=31 // pred_region
        %p140 = scmp.lt.s32.totalorder %s13, 1
        %s141 = scalar_select %p140, %s13, 1
        %s142 = smul.addr %s141, 8
        %s143 = scalar_lea.vmem %s1, %s142
      $region36: #{_mish_impl.1} parent=31 // pred_fallthru
        _
    $region32: #{_mish_impl.1} parent=5 // pred_fallthru
      _
  $region6: #{_mish_impl.1} parent=0 // loop_footer
    %s11 = sadd.s32 1, %s7
  $region7: #{_mish_impl.1} parent=0 // loop_footer_branch
    %6 = sbr.rel target = $region3
  $region8: #{_mish_impl.1} parent=0 // loop_exit
    _

</llo_original>
